<compile_context>
chip_gen: v5e
topology: v5e:2x2
jax: 0.10.0
libtpu: 0.0.40
codegen_flags: <defaults>
</compile_context>

<pallas_src>
import functools

import jax
import jax.numpy as jnp
from jax.experimental import pallas as pl
from jax.experimental.pallas import tpu as pltpu

NEG_SLOPE = 0.2  # nn.LeakyReLU(0.2)


# ----------------------------------------------------------------------------
# Fused Pallas kernel: Linear -> LeakyReLU -> (w2-row reduce) -> Sigmoid
# ----------------------------------------------------------------------------
def _disc_kernel(x_ref, w1_ref, b1_ref, w2_ref, b2_ref, out_ref):
    # x: (TM, D_in) bf16, w1: (D_in, H_pad) bf16  -> f32 accumulation on MXU
    h = jnp.dot(x_ref[...], w1_ref[...], preferred_element_type=jnp.float32)
    h = h + b1_ref[...]                                   # (TM, H_pad) f32

    # LeakyReLU(0.2): single VPU max
    h = jnp.maximum(h, NEG_SLOPE * h)

    # Second "Linear(H, 1)" as broadcast-mul + row reduction (VPU/XLU, not MXU)
    z = jnp.sum(h * w2_ref[...], axis=-1, keepdims=True) + b2_ref[...]  # (TM,1)

    # Sigmoid; divide goes to the otherwise-idle EUP via approx reciprocal
    out_ref[...] = pl.reciprocal(1.0 + jnp.exp(-z), approx=True)


# ----------------------------------------------------------------------------
# Spectral norm (weight preprocessing; matches torch.nn.utils.spectral_norm
# forward: one power iteration, then W / sigma).  Tiny matvecs -> plain JAX.
# ----------------------------------------------------------------------------
def _spectral_normalize(w, u, n_power_iterations=1, eps=1e-12):
    v = w.T @ u
    v = v / (jnp.linalg.norm(v) + eps)
    for _ in range(n_power_iterations - 1):
        u = w @ v
        u = u / (jnp.linalg.norm(u) + eps)
        v = w.T @ u
        v = v / (jnp.linalg.norm(v) + eps)
    u = w @ v
    u = u / (jnp.linalg.norm(u) + eps)
    sigma = jnp.dot(u, w @ v)
    return w / sigma
# TODO(synk): power-iteration vectors u1/u2 are not persisted back (eval-style
# forward equivalence only, matching a single call of the PyTorch module).


# ----------------------------------------------------------------------------
# Wrapper
# ----------------------------------------------------------------------------
@functools.partial(jax.jit, static_argnames=("n_feat", "sep", "size", "n_blocks"))
def disc_forward(x, params, *, n_feat, sep, size, n_blocks):
    n_res = (size // (2 ** n_blocks)) ** 2
    d_in = (n_feat - sep) * n_res

    # x.view(-1, (n_feat - sep) * n_res)
    xf = x.reshape(-1, d_in)
    batch = xf.shape[0]

    # --- batch tiling (keeps VMEM bounded on v5e/v6e/v7x and enables
    #     double-buffered pipelining of the x stream) ---
    TM = 1024
    if batch <= TM:
        TM = max(8, ((batch + 7) // 8) * 8)       # single tile, sublane-aligned
    padded_b = pl.cdiv(batch, TM) * TM
    num_tiles = padded_b // TM

    xf = xf.astype(jnp.bfloat16)                  # halve HBM traffic for x
    if padded_b != batch:
        xf = jnp.pad(xf, ((0, padded_b - batch), (0, 0)))

    # --- spectral_norm on both Linear weights (bias untouched, as in PyTorch)
    w1 = _spectral_normalize(params["w1"], params["u1"])      # (n_feat, d_in)
    w2 = _spectral_normalize(params["w2"], params["u2"])      # (1, n_feat)

    # --- pad hidden width to a lane-dense multiple of 128 (zero padding is
    #     inert: padded h columns are 0 and padded w2 entries are 0) ---
    h_pad = max(128, ((n_feat + 127) // 128) * 128)
    pad_h = h_pad - n_feat

    w1t = jnp.transpose(w1)                                   # (d_in, n_feat)
    w1t = jnp.pad(w1t, ((0, 0), (0, pad_h))).astype(jnp.bfloat16)   # (d_in,H_pad)
    b1 = jnp.pad(params["b1"], ((0, pad_h),)).reshape(1, h_pad).astype(jnp.float32)
    w2r = jnp.pad(w2.reshape(1, n_feat), ((0, 0), (0, pad_h))).astype(jnp.float32)
    b2 = params["b2"].reshape(1, 1).astype(jnp.float32)

    cost = pl.CostEstimate(
        flops=2 * padded_b * d_in * h_pad + 4 * padded_b * h_pad,
        transcendentals=padded_b,
        bytes_accessed=padded_b * d_in * 2 + d_in * h_pad * 2
        + 2 * h_pad * 4 + padded_b * 4,
    )

    out = pl.pallas_call(
        _disc_kernel,
        out_shape=jax.ShapeDtypeStruct((padded_b, 1), jnp.float32),
        grid=(num_tiles,),
        in_specs=[
            pl.BlockSpec((TM, d_in), lambda i: (i, 0)),       # x: streamed
            pl.BlockSpec((d_in, h_pad), lambda i: (0, 0)),    # w1: resident
            pl.BlockSpec((1, h_pad), lambda i: (0, 0)),       # b1: resident
            pl.BlockSpec((1, h_pad), lambda i: (0, 0)),       # w2 row: resident
            pl.BlockSpec((1, 1), lambda i: (0, 0)),           # b2: resident
        ],
        out_specs=pl.BlockSpec((TM, 1), lambda i: (i, 0)),
        compiler_params=pltpu.CompilerParams(
            dimension_semantics=("parallel",)),
        cost_estimate=cost,
    )(xf, w1t, b1, w2r, b2)

    return out[:batch].reshape(-1)                            # (B,)


# ----------------------------------------------------------------------------
# Deterministic synthetic parameters matching Disc.__init__ shapes
# ----------------------------------------------------------------------------
def init_disc_params(key, n_feat, sep, size, n_blocks):
    n_res = (size // (2 ** n_blocks)) ** 2
    d_in = (n_feat - sep) * n_res
    k1, k2, k3, k4, k5, k6 = jax.random.split(key, 6)

    w1 = jax.random.normal(k1, (n_feat, d_in), jnp.float32) / jnp.sqrt(d_in)
    b1 = jax.random.normal(k2, (n_feat,), jnp.float32) * 0.01
    w2 = jax.random.normal(k3, (1, n_feat), jnp.float32) / jnp.sqrt(n_feat)
    b2 = jax.random.normal(k4, (1,), jnp.float32) * 0.01

    # spectral-norm power-iteration vectors (PyTorch stores a random unit `u`)
    u1 = jax.random.normal(k5, (n_feat,), jnp.float32)
    u1 = u1 / jnp.linalg.norm(u1)
    u2 = jax.random.normal(k6, (1,), jnp.float32)
    u2 = u2 / jnp.linalg.norm(u2)

    return {"w1": w1, "b1": b1, "w2": w2, "b2": b2, "u1": u1, "u2": u2}


if __name__ == "__main__":
    # Small config consistent with the module: n_feat=64, sep=32, size=16,
    # n_blocks=2  ->  n_res = (16 // 4)^2 = 16, flattened D_in = 32 * 16 = 512.
    n_feat, sep, size, n_blocks = 64, 32, 16, 2
    batch = 2
    spatial = size // (2 ** n_blocks)                         # 4

    key = jax.random.PRNGKey(0)
    kx, kp = jax.random.split(key)

    # Feature-map style input (B, n_feat - sep, s, s); forward flattens it.
    x = jax.random.normal(kx, (batch, n_feat - sep, spatial, spatial), jnp.float32)
    params = init_disc_params(kp, n_feat, sep, size, n_blocks)

    out = disc_forward(x, params, n_feat=n_feat, sep=sep, size=size,
                       n_blocks=n_blocks)
    out = jax.block_until_ready(out)

    assert out.shape == (batch,), out.shape
    assert bool(jnp.all(jnp.isfinite(out)))
    assert bool(jnp.all((out >= 0.0) & (out <= 1.0)))         # sigmoid range

    print("KERNEL_OK")
</pallas_src>

<mosaic_0001>
module attributes {stable_mosaic.version = 11 : i64} {
  func.func @_disc_kernel(%arg0: i32, %arg1: memref<8x512xbf16, #tpu.memory_space<vmem>>, %arg2: memref<512x128xbf16, #tpu.memory_space<vmem>>, %arg3: memref<1x128xf32, #tpu.memory_space<vmem>>, %arg4: memref<1x128xf32, #tpu.memory_space<vmem>>, %arg5: memref<1x1xf32, #tpu.memory_space<vmem>>, %arg6: memref<8x1xf32, #tpu.memory_space<vmem>>) attributes {dimension_semantics = [#tpu.dimension_semantics<parallel>], iteration_bounds = array<i64: 1>, scalar_prefetch = 0 : i64, scratch_operands = 0 : i64, tpu.core_type = #tpu.core_type<tc>, window_params = [{transform_indices = @transform_0, window_bounds = array<i64: 8, 512>}, {pipeline_mode = #tpu.pipeline_mode<synchronous>, transform_indices = @transform_1, window_bounds = array<i64: 512, 128>}, {pipeline_mode = #tpu.pipeline_mode<synchronous>, transform_indices = @transform_2, window_bounds = array<i64: 1, 128>}, {pipeline_mode = #tpu.pipeline_mode<synchronous>, transform_indices = @transform_3, window_bounds = array<i64: 1, 128>}, {pipeline_mode = #tpu.pipeline_mode<synchronous>, transform_indices = @transform_4, window_bounds = array<i64: 1, 1>}, {transform_indices = @transform_5, window_bounds = array<i64: 8, 1>}]} {
    %c0 = arith.constant 0 : index
    %c0_0 = arith.constant 0 : index
    %0 = vector.load %arg1[%c0, %c0_0] : memref<8x512xbf16, #tpu.memory_space<vmem>>, vector<8x512xbf16>
    %c0_1 = arith.constant 0 : index
    %c0_2 = arith.constant 0 : index
    %1 = vector.load %arg2[%c0_1, %c0_2] : memref<512x128xbf16, #tpu.memory_space<vmem>>, vector<512x128xbf16>
    %cst = arith.constant dense<0.000000e+00> : vector<8x128xf32>
    %2 = tpu.matmul %0, %1, %cst {dimension_numbers = #tpu.dot_dimension_numbers<[1], [0], [0], [1], [0, 0, 1, 1], [], []>} : vector<8x512xbf16>, vector<512x128xbf16>, vector<8x128xf32> -> vector<8x128xf32>
    %c0_3 = arith.constant 0 : index
    %c0_4 = arith.constant 0 : index
    %3 = vector.load %arg3[%c0_3, %c0_4] : memref<1x128xf32, #tpu.memory_space<vmem>>, vector<1x128xf32>
    %4 = vector.broadcast %3 : vector<1x128xf32> to vector<8x128xf32>
    %5 = arith.addf %2, %4 : vector<8x128xf32>
    %cst_5 = arith.constant 2.000000e-01 : f32
    %6 = vector.broadcast %cst_5 : f32 to vector<8x128xf32>
    %7 = arith.mulf %6, %5 : vector<8x128xf32>
    %8 = arith.maximumf %5, %7 : vector<8x128xf32>
    %c0_6 = arith.constant 0 : index
    %c0_7 = arith.constant 0 : index
    %9 = vector.load %arg4[%c0_6, %c0_7] : memref<1x128xf32, #tpu.memory_space<vmem>>, vector<1x128xf32>
    %10 = vector.broadcast %9 : vector<1x128xf32> to vector<8x128xf32>
    %11 = arith.mulf %8, %10 : vector<8x128xf32>
    %cst_8 = arith.constant dense<0.000000e+00> : vector<8xf32>
    %12 = vector.multi_reduction <add>, %11, %cst_8 [1] : vector<8x128xf32> to vector<8xf32>
    %13 = vector.shape_cast %12 : vector<8xf32> to vector<8x1xf32>
    %c0_9 = arith.constant 0 : index
    %c0_10 = arith.constant 0 : index
    %14 = vector.load %arg5[%c0_9, %c0_10] : memref<1x1xf32, #tpu.memory_space<vmem>>, vector<1x1xf32>
    %15 = vector.broadcast %14 : vector<1x1xf32> to vector<8x1xf32>
    %16 = arith.addf %13, %15 : vector<8x1xf32>
    %cst_11 = arith.constant 0.000000e+00 : f32
    %17 = vector.broadcast %cst_11 : f32 to vector<8x1xf32>
    %18 = arith.subf %17, %16 : vector<8x1xf32>
    %19 = math.exp %18 : vector<8x1xf32>
    %cst_12 = arith.constant 1.000000e+00 : f32
    %20 = vector.broadcast %cst_12 : f32 to vector<8x1xf32>
    %21 = arith.addf %20, %19 : vector<8x1xf32>
    %22 = tpu.reciprocal %21 {approx = true} : vector<8x1xf32> -> vector<8x1xf32>
    %c0_13 = arith.constant 0 : index
    %c0_14 = arith.constant 0 : index
    %23 = vector.load %arg6[%c0_13, %c0_14] : memref<8x1xf32, #tpu.memory_space<vmem>>, vector<8x1xf32>
    tpu.vector_store %arg6[%c0_13, %c0_14], %22 {strides = array<i32>} : memref<8x1xf32, #tpu.memory_space<vmem>>, vector<8x1xf32>,
    return
  }
  func.func @transform_0(%arg0: i32) -> (i32, i32) {
    %c0_i32 = arith.constant 0 : i32
    %c0_i32_0 = arith.constant 0 : i32
    return %arg0, %c0_i32 : i32, i32
  }
  func.func @transform_1(%arg0: i32) -> (i32, i32) {
    %c0_i32 = arith.constant 0 : i32
    %c0_i32_0 = arith.constant 0 : i32
    %c0_i32_1 = arith.constant 0 : i32
    return %c0_i32, %c0_i32_0 : i32, i32
  }
  func.func @transform_2(%arg0: i32) -> (i32, i32) {
    %c0_i32 = arith.constant 0 : i32
    %c0_i32_0 = arith.constant 0 : i32
    %c0_i32_1 = arith.constant 0 : i32
    return %c0_i32, %c0_i32_0 : i32, i32
  }
  func.func @transform_3(%arg0: i32) -> (i32, i32) {
    %c0_i32 = arith.constant 0 : i32
    %c0_i32_0 = arith.constant 0 : i32
    %c0_i32_1 = arith.constant 0 : i32
    return %c0_i32, %c0_i32_0 : i32, i32
  }
  func.func @transform_4(%arg0: i32) -> (i32, i32) {
    %c0_i32 = arith.constant 0 : i32
    %c0_i32_0 = arith.constant 0 : i32
    %c0_i32_1 = arith.constant 0 : i32
    return %c0_i32, %c0_i32_0 : i32, i32
  }
  func.func @transform_5(%arg0: i32) -> (i32, i32) {
    %c0_i32 = arith.constant 0 : i32
    %c0_i32_0 = arith.constant 0 : i32
    return %arg0, %c0_i32 : i32, i32
  }
}

</mosaic_0001>

<llo_original>
// kernel: disc_forward.1
$region0: #{disc_forward.1}
  #allocation0 [shape = 'u32[]', space=smem, size = 0x4, offset = 0x4, fixed_abs, tag = 'smem constant byte address 0x4 - core index']
  #allocation1 [shape = 'u32[72,128]{1,0:T(1,128)}', space=vmem, size = 0x9000, scoped, tag = 'internal scratch']
  #allocation2 [shape = 'f32[1,1]{1,0:T(1,128)S(1)}', space=vmem, size = 0x200, scoped, tag = 'scoped memory for disc_forward.1']
  %s0 = inlined_call_operand.vmem [shape: bf16[8,512], index: 0, kind: input, shape index: {}]
  %s1 = inlined_call_operand.vmem [shape: bf16[512,128], index: 1, kind: input, shape index: {}]
  %s2 = inlined_call_operand.vmem [shape: f32[1,128], index: 2, kind: input, shape index: {}]
  %s3 = inlined_call_operand.vmem [shape: f32[1,128], index: 3, kind: input, shape index: {}]
  %s4 = inlined_call_operand.<no memory space> [shape: f32[1,1], index: 4, kind: input, shape index: {}]
  %s5 = inlined_call_operand.vmem [shape: f32[8,1], index: 5, kind: output, shape index: {}]
  %s6 = sld [smem:[#allocation0]]
  $region30: #{disc_forward.1} parent=0
    _
  %s8 = ssub.s32 1, %s6
  %s9 = scalar_select 0, %s8, %s6
  %v10 = vstv %s4
  %11 = vst [vmem:[#allocation2] sm:$0x1] %v10
  // Predicated region
  $region2: #{disc_forward.1} parent=0 // pred_check
    _
  $region3: #{disc_forward.1} parent=0 // pred_check_branch
    %13 = sbr.rel (0) target = $region5
  $region4: #{disc_forward.1} parent=0 // pred_region
    _
  $region5: #{disc_forward.1} parent=0 // pred_fallthru
    _
  // Predicated region
  $region6: #{disc_forward.1} parent=0 // pred_check
    _
  $region7: #{disc_forward.1} parent=0 // pred_check_branch
    %15 = sbr.rel (0) target = $region9
  $region8: #{disc_forward.1} parent=0 // pred_region
    _
  $region9: #{disc_forward.1} parent=0 // pred_fallthru
    _
  // Predicated region
  $region10: #{disc_forward.1} parent=0 // pred_check
    _
  $region11: #{disc_forward.1} parent=0 // pred_check_branch
    %17 = sbr.rel (0) target = $region13
  $region12: #{disc_forward.1} parent=0 // pred_region
    _
  $region13: #{disc_forward.1} parent=0 // pred_fallthru
    _
  // Predicated region
  $region14: #{disc_forward.1} parent=0 // pred_check
    _
  $region15: #{disc_forward.1} parent=0 // pred_check_branch
    %19 = sbr.rel (0) target = $region17
  $region16: #{disc_forward.1} parent=0 // pred_region
    _
  $region17: #{disc_forward.1} parent=0 // pred_fallthru
    _
  // Predicated region
  $region18: #{disc_forward.1} parent=0 // pred_check
    _
  $region19: #{disc_forward.1} parent=0 // pred_check_branch
    %21 = sbr.rel (0) target = $region21
  $region20: #{disc_forward.1} parent=0 // pred_region
    _
  $region21: #{disc_forward.1} parent=0 // pred_fallthru
    _
  %v22 = vld [vmem:[%s0] sm:$0xff]
  %v23 = vld [vmem:[%s0 + $0x8] sm:$0xff]
  %v24 = vld [vmem:[%s1] sm:$0xf]
  %v25 = vld [vmem:[%s1 + $0x4] sm:$0xf]
  %v26 = vld [vmem:[%s1 + $0x8] sm:$0xf]
  %v27 = vld [vmem:[%s1 + $0xc] sm:$0xf]
  %v28 = vld [vmem:[%s1 + $0x10] sm:$0xf]
  %v29 = vld [vmem:[%s1 + $0x14] sm:$0xf]
  %v30 = vld [vmem:[%s1 + $0x18] sm:$0xf]
  %v31 = vld [vmem:[%s1 + $0x1c] sm:$0xf]
  %v32 = vld [vmem:[%s1 + $0x20] sm:$0xf]
  %v33 = vld [vmem:[%s1 + $0x24] sm:$0xf]
  %v34 = vld [vmem:[%s1 + $0x28] sm:$0xf]
  %v35 = vld [vmem:[%s1 + $0x2c] sm:$0xf]
  %v36 = vld [vmem:[%s1 + $0x30] sm:$0xf]
  %v37 = vld [vmem:[%s1 + $0x34] sm:$0xf]
  %v38 = vld [vmem:[%s1 + $0x38] sm:$0xf]
  %v39 = vld [vmem:[%s1 + $0x3c] sm:$0xf]
  %v40 = vld [vmem:[%s1 + $0x40] sm:$0xf]
  %v41 = vld [vmem:[%s1 + $0x44] sm:$0xf]
  %v42 = vld [vmem:[%s1 + $0x48] sm:$0xf]
  %v43 = vld [vmem:[%s1 + $0x4c] sm:$0xf]
  %v44 = vld [vmem:[%s1 + $0x50] sm:$0xf]
  %v45 = vld [vmem:[%s1 + $0x54] sm:$0xf]
  %v46 = vld [vmem:[%s1 + $0x58] sm:$0xf]
  %v47 = vld [vmem:[%s1 + $0x5c] sm:$0xf]
  %v48 = vld [vmem:[%s1 + $0x60] sm:$0xf]
  %v49 = vld [vmem:[%s1 + $0x64] sm:$0xf]
  %v50 = vld [vmem:[%s1 + $0x68] sm:$0xf]
  %v51 = vld [vmem:[%s1 + $0x6c] sm:$0xf]
  %v52 = vld [vmem:[%s1 + $0x70] sm:$0xf]
  %v53 = vld [vmem:[%s1 + $0x74] sm:$0xf]
  %v54 = vld [vmem:[%s1 + $0x78] sm:$0xf]
  %v55 = vld [vmem:[%s1 + $0x7c] sm:$0xf]
  %v56 = vld [vmem:[%s1 + $0x80] sm:$0xf]
  %v57 = vld [vmem:[%s1 + $0x84] sm:$0xf]
  %v58 = vld [vmem:[%s1 + $0x88] sm:$0xf]
  %v59 = vld [vmem:[%s1 + $0x8c] sm:$0xf]
  %v60 = vld [vmem:[%s1 + $0x90] sm:$0xf]
  %v61 = vld [vmem:[%s1 + $0x94] sm:$0xf]
  %v62 = vld [vmem:[%s1 + $0x98] sm:$0xf]
  %v63 = vld [vmem:[%s1 + $0x9c] sm:$0xf]
  %v64 = vld [vmem:[%s1 + $0xa0] sm:$0xf]
  %v65 = vld [vmem:[%s1 + $0xa4] sm:$0xf]
  %v66 = vld [vmem:[%s1 + $0xa8] sm:$0xf]
  %v67 = vld [vmem:[%s1 + $0xac] sm:$0xf]
  %v68 = vld [vmem:[%s1 + $0xb0] sm:$0xf]
  %v69 = vld [vmem:[%s1 + $0xb4] sm:$0xf]
  %v70 = vld [vmem:[%s1 + $0xb8] sm:$0xf]
  %v71 = vld [vmem:[%s1 + $0xbc] sm:$0xf]
  %v72 = vld [vmem:[%s1 + $0xc0] sm:$0xf]
  %v73 = vld [vmem:[%s1 + $0xc4] sm:$0xf]
  %v74 = vld [vmem:[%s1 + $0xc8] sm:$0xf]
  %v75 = vld [vmem:[%s1 + $0xcc] sm:$0xf]
  %v76 = vld [vmem:[%s1 + $0xd0] sm:$0xf]
  %v77 = vld [vmem:[%s1 + $0xd4] sm:$0xf]
  %v78 = vld [vmem:[%s1 + $0xd8] sm:$0xf]
  %v79 = vld [vmem:[%s1 + $0xdc] sm:$0xf]
  %v80 = vld [vmem:[%s1 + $0xe0] sm:$0xf]
  %v81 = vld [vmem:[%s1 + $0xe4] sm:$0xf]
  %v82 = vld [vmem:[%s1 + $0xe8] sm:$0xf]
  %v83 = vld [vmem:[%s1 + $0xec] sm:$0xf]
  %v84 = vld [vmem:[%s1 + $0xf0] sm:$0xf]
  %v85 = vld [vmem:[%s1 + $0xf4] sm:$0xf]
  %v86 = vld [vmem:[%s1 + $0xf8] sm:$0xf]
  %v87 = vld [vmem:[%s1 + $0xfc] sm:$0xf]
  %v88 = vld [vmem:[%s2] sm:$0x1]
  %v90 = vperm.slane %v88, 0
  %v94 = vunpack.c.l.b16 %v22
  %v95 = vunpack.c.h.b16 %v22
  %v96 = vunpack.c.l.b16 %v23
  %v97 = vunpack.c.h.b16 %v23
  %v98 = vpack.c.b16 %v94, %v94
  %v99 = vpack.c.b16 %v95, %v95
  %v100 = vpack.c.b16 %v96, %v96
  %v101 = vpack.c.b16 %v97, %v97
  %v170 = vunpack.c.l.b16 %v24
  %v171 = vunpack.c.l.b16 %v25
  %v172 = vunpack.c.l.b16 %v26
  %v173 = vunpack.c.l.b16 %v27
  %v174 = vunpack.c.l.b16 %v28
  %v175 = vunpack.c.l.b16 %v29
  %v176 = vunpack.c.l.b16 %v30
  %v177 = vunpack.c.l.b16 %v31
  %v178 = vunpack.c.l.b16 %v32
  %v179 = vunpack.c.l.b16 %v33
  %v180 = vunpack.c.l.b16 %v34
  %v181 = vunpack.c.l.b16 %v35
  %v182 = vunpack.c.l.b16 %v36
  %v183 = vunpack.c.l.b16 %v37
  %v184 = vunpack.c.l.b16 %v38
  %v185 = vunpack.c.l.b16 %v39
  %v186 = vunpack.c.l.b16 %v40
  %v187 = vunpack.c.l.b16 %v41
  %v188 = vunpack.c.l.b16 %v42
  %v189 = vunpack.c.l.b16 %v43
  %v190 = vunpack.c.l.b16 %v44
  %v191 = vunpack.c.l.b16 %v45
  %v192 = vunpack.c.l.b16 %v46
  %v193 = vunpack.c.l.b16 %v47
  %v194 = vunpack.c.l.b16 %v48
  %v195 = vunpack.c.l.b16 %v49
  %v196 = vunpack.c.l.b16 %v50
  %v197 = vunpack.c.l.b16 %v51
  %v198 = vunpack.c.l.b16 %v52
  %v199 = vunpack.c.l.b16 %v53
  %v200 = vunpack.c.l.b16 %v54
  %v201 = vunpack.c.l.b16 %v55
  %v202 = vunpack.c.l.b16 %v56
  %v203 = vunpack.c.l.b16 %v57
  %v204 = vunpack.c.l.b16 %v58
  %v205 = vunpack.c.l.b16 %v59
  %v206 = vunpack.c.l.b16 %v60
  %v207 = vunpack.c.l.b16 %v61
  %v208 = vunpack.c.l.b16 %v62
  %v209 = vunpack.c.l.b16 %v63
  %v210 = vunpack.c.l.b16 %v64
  %v211 = vunpack.c.l.b16 %v65
  %v212 = vunpack.c.l.b16 %v66
  %v213 = vunpack.c.l.b16 %v67
  %v214 = vunpack.c.l.b16 %v68
  %v215 = vunpack.c.l.b16 %v69
  %v216 = vunpack.c.l.b16 %v70
  %v217 = vunpack.c.l.b16 %v71
  %v218 = vunpack.c.l.b16 %v72
  %v219 = vunpack.c.l.b16 %v73
  %v220 = vunpack.c.l.b16 %v74
  %v221 = vunpack.c.l.b16 %v75
  %v222 = vunpack.c.l.b16 %v76
  %v223 = vunpack.c.l.b16 %v77
  %v224 = vunpack.c.l.b16 %v78
  %v225 = vunpack.c.l.b16 %v79
  %v226 = vunpack.c.l.b16 %v80
  %v227 = vunpack.c.l.b16 %v81
  %v228 = vunpack.c.l.b16 %v82
  %v229 = vunpack.c.l.b16 %v83
  %v230 = vunpack.c.l.b16 %v84
  %v231 = vunpack.c.l.b16 %v85
  %v232 = vunpack.c.l.b16 %v86
  %v233 = vunpack.c.l.b16 %v87
  %v234 = vpack.c.b16 %v171, %v170
  %v235 = vpack.c.b16 %v173, %v172
  %v236 = vpack.c.b16 %v175, %v174
  %v237 = vpack.c.b16 %v177, %v176
  %v238 = vpack.c.b16 %v179, %v178
  %v239 = vpack.c.b16 %v181, %v180
  %v240 = vpack.c.b16 %v183, %v182
  %v241 = vpack.c.b16 %v185, %v184
  %v242 = vpack.c.b16 %v187, %v186
  %v243 = vpack.c.b16 %v189, %v188
  %v244 = vpack.c.b16 %v191, %v190
  %v245 = vpack.c.b16 %v193, %v192
  %v246 = vpack.c.b16 %v195, %v194
  %v247 = vpack.c.b16 %v197, %v196
  %v248 = vpack.c.b16 %v199, %v198
  %v249 = vpack.c.b16 %v201, %v200
  %v250 = vpack.c.b16 %v203, %v202
  %v251 = vpack.c.b16 %v205, %v204
  %v252 = vpack.c.b16 %v207, %v206
  %v253 = vpack.c.b16 %v209, %v208
  %v254 = vpack.c.b16 %v211, %v210
  %v255 = vpack.c.b16 %v213, %v212
  %v256 = vpack.c.b16 %v215, %v214
  %v257 = vpack.c.b16 %v217, %v216
  %v258 = vpack.c.b16 %v219, %v218
  %v259 = vpack.c.b16 %v221, %v220
  %v260 = vpack.c.b16 %v223, %v222
  %v261 = vpack.c.b16 %v225, %v224
  %v262 = vpack.c.b16 %v227, %v226
  %v263 = vpack.c.b16 %v229, %v228
  %v264 = vpack.c.b16 %v231, %v230
  %v265 = vpack.c.b16 %v233, %v232
  %298 = vmatpush.bf16.msra.mxu0 %v241
  %299 = vmatpush.bf16.msra.mxu0 %v240
  %300 = vmatpush.bf16.msra.mxu0 %v239
  %301 = vmatpush.bf16.msra.mxu0 %v238
  %302 = vmatpush.bf16.msra.mxu0 %v237
  %303 = vmatpush.bf16.msra.mxu0 %v236
  %304 = vmatpush.bf16.msra.mxu0 %v235
  %305 = vmatpush.bf16.msra.mxu0 %v234
  %306 = vmatmul.bf16.gmra.mxu0 %v98
  %v307 = vpop.f32.mrf.mxu0
  %v308 = vadd.f32 %v90, %v307
  %v309 = vpop.f32.mrf.mxu0
  %310 = vdwg.mxu0
  %311 = vmatpush.bf16.msra.mxu0 %v249
  %312 = vmatpush.bf16.msra.mxu0 %v248
  %313 = vmatpush.bf16.msra.mxu0 %v247
  %314 = vmatpush.bf16.msra.mxu0 %v246
  %315 = vmatpush.bf16.msra.mxu0 %v245
  %316 = vmatpush.bf16.msra.mxu0 %v244
  %317 = vmatpush.bf16.msra.mxu0 %v243
  %318 = vmatpush.bf16.msra.mxu0 %v242
  %319 = vmatmul.bf16.gmra.mxu0 %v99
  %v320 = vpop.f32.mrf.mxu0
  %v321 = vadd.f32 %v308, %v320
  %v322 = vpop.f32.mrf.mxu0
  %323 = vdwg.mxu0
  %324 = vmatpush.bf16.msra.mxu0 %v257
  %325 = vmatpush.bf16.msra.mxu0 %v256
  %326 = vmatpush.bf16.msra.mxu0 %v255
  %327 = vmatpush.bf16.msra.mxu0 %v254
  %328 = vmatpush.bf16.msra.mxu0 %v253
  %329 = vmatpush.bf16.msra.mxu0 %v252
  %330 = vmatpush.bf16.msra.mxu0 %v251
  %331 = vmatpush.bf16.msra.mxu0 %v250
  %332 = vmatmul.bf16.gmra.mxu0 %v100
  %v333 = vpop.f32.mrf.mxu0
  %v334 = vadd.f32 %v321, %v333
  %v335 = vpop.f32.mrf.mxu0
  %336 = vdwg.mxu0
  %337 = vmatpush.bf16.msra.mxu0 %v265
  %338 = vmatpush.bf16.msra.mxu0 %v264
  %339 = vmatpush.bf16.msra.mxu0 %v263
  %340 = vmatpush.bf16.msra.mxu0 %v262
  %341 = vmatpush.bf16.msra.mxu0 %v261
  %342 = vmatpush.bf16.msra.mxu0 %v260
  %343 = vmatpush.bf16.msra.mxu0 %v259
  %344 = vmatpush.bf16.msra.mxu0 %v258
  %345 = vmatmul.bf16.gmra.mxu0 %v101
  %v346 = vpop.f32.mrf.mxu0
  %v347 = vadd.f32 %v334, %v346
  %v348 = vpop.f32.mrf.mxu0
  %349 = vdwg.mxu0
  %v350 = vmul.f32 %v347, 0.2
  %v351 = vmax.f32 %v347, %v350
  %v352 = vld [vmem:[%s3] sm:$0x1]
  %v354 = vperm.slane %v352, 0
  %v356 = vmul.f32 %v351, %v354
  %357 = vadd.xlane.f32.xlu0 %v356
  %v358 = vpop.xlane.xlu0 %357
  %v359 = vld [vmem:[#allocation2] sm:$0x1]
  %v361 = vperm.slane %v359, 0
  %v363 = vadd.f32 %v358, %v361
  %v364 = vsub.f32 0.0, %v363
  %v365 = vmul.f32 %v364, 1.442695
  %v366 = vpow.pop %v365
  %v367 = vadd.f32 %v366, 1.0
  %v368 = vrcp.pop %v367
  %vm369 = vcmask 7168
  %370 = vst.msk [vmem:[%s5] sm:$0xff] %vm369, %v368
  // Predicated region
  $region22: #{disc_forward.1} parent=0 // pred_check
    _
  $region23: #{disc_forward.1} parent=0 // pred_check_branch
    %372 = sbr.rel (0) target = $region25
  $region24: #{disc_forward.1} parent=0 // pred_region
    _
  $region25: #{disc_forward.1} parent=0 // pred_fallthru
    _
  // Predicated region
  $region26: #{disc_forward.1} parent=0 // pred_check
    _
  $region27: #{disc_forward.1} parent=0 // pred_check_branch
    %374 = sbr.rel (0) target = $region29
  $region28: #{disc_forward.1} parent=0 // pred_region
    _
  $region29: #{disc_forward.1} parent=0 // pred_fallthru
    _

</llo_original>
